<compile_context>
chip_gen: v7x
topology: tpu7x:2x2x1
jax: 0.10.0
libtpu: 0.0.40
codegen_flags: <defaults>
</compile_context>

<pallas_src>
import jax
import jax.numpy as jnp
from jax.experimental import pallas as pl
from jax.experimental.pallas import tpu as pltpu


def _normalize_kernel(sb_ref, x_ref, o_ref):
    # sb_ref: (TR, 2) f32 — column 0 = 1/sd, column 1 = -mean/sd (per row)
    # x_ref:  (TR, TL) input tile
    # o_ref:  (TR, TL) output tile
    sb = sb_ref[...]
    scale = sb[:, 0:1]
    bias = sb[:, 1:2]
    # f32 math via jnp promotion, cast once on the way out.
    o_ref[...] = (x_ref[...] * scale + bias).astype(o_ref.dtype)


def _sublane_multiple(itemsize: int) -> int:
    # Native packed sublane tile: 8 for 4-byte, 16 for 2-byte, 32 for 1-byte.
    return max(8, 32 // max(1, itemsize))


def _vmem_capacity_bytes() -> int:
    try:
        return int(pltpu.get_tpu_info().vmem_capacity_bytes)
    except Exception:
        return 64 * 1024 * 1024  # conservative (v7x per-core VMEM)


def _has_two_tensorcores() -> bool:
    # v7x has 2 TensorCores per chip; v5e/v6e have 1.
    try:
        return "v7" in jax.devices()[0].device_kind.lower()
    except Exception:
        return False


def normalize_layer(x: jax.Array, means: jax.Array, sds: jax.Array) -> jax.Array:
    """(x - means[c]) / sds[c] applied channelwise to an NCHW batch."""
    B, C, H, W = x.shape

    in_dtype = x.dtype
    # PyTorch's forward yields a float result; don't truncate integer inputs.
    out_dtype = in_dtype if jnp.issubdtype(in_dtype, jnp.floating) else jnp.float32

    # Per-channel constants in f32; the divide happens once here.
    means_f32 = means.astype(jnp.float32)
    sds_f32 = sds.astype(jnp.float32)
    scale_c = 1.0 / sds_f32            # (C,)
    bias_c = -means_f32 * scale_c      # (C,)

    # Lane-dense 2D view: rows = (b, c) planes, lanes = H*W pixels.
    R = B * C
    L = H * W
    x2 = x.reshape(R, L)

    # Pack per-row (scale, bias) into a single (R, 2) f32 side input.
    sb_c = jnp.stack([scale_c, bias_c], axis=-1)                 # (C, 2)
    sb_r = jnp.broadcast_to(sb_c[None], (B, C, 2)).reshape(R, 2)  # (R, 2)

    itemsize = jnp.dtype(in_dtype).itemsize
    out_itemsize = jnp.dtype(out_dtype).itemsize
    subl = _sublane_multiple(itemsize)

    # Generation-aware budgets: ~4 MiB blocks saturate the HBM roofline;
    # never more than vmem/16 so double-buffered in+out stays well under the
    # scoped limit (which we set to half the physical VMEM).
    vmem_cap = _vmem_capacity_bytes()
    target_block_bytes = min(4 * 1024 * 1024, vmem_cap // 16)
    vmem_limit = min(vmem_cap // 2, 64 * 1024 * 1024)

    # Lane tiling only when a single row does not fit the block budget.
    row_bytes = L * itemsize
    if row_bytes > target_block_bytes:
        tl = max(128, (target_block_bytes // itemsize // 128) * 128)
        tl = min(tl, L)
    else:
        tl = L

    # Row-block size: fill the budget, rounded to the dtype's sublane tile.
    tile_row_bytes = tl * max(itemsize, out_itemsize)
    tr = max(1, target_block_bytes // max(1, tile_row_bytes))
    if tr >= R:
        tr = R
    else:
        tr = max(subl, (tr // subl) * subl)
        tr = min(tr, R)

    # v7x: shard the row axis across both TensorCores.  Requires >= 2 grid
    # steps along that axis, so split the row extent if the grid collapsed.
    want_core_parallel = _has_two_tensorcores()
    grid_rows = pl.cdiv(R, tr)
    if want_core_parallel and grid_rows < 2 and R >= 2 * subl:
        half = (R + 1) // 2
        tr = min(((half + subl - 1) // subl) * subl, R)
        grid_rows = pl.cdiv(R, tr)
    grid_cols = pl.cdiv(L, tl)

    if want_core_parallel and grid_rows >= 2:
        row_sem = pltpu.CORE_PARALLEL
    else:
        row_sem = pltpu.PARALLEL

    cost = pl.CostEstimate(
        flops=2 * R * L,
        bytes_accessed=R * L * (itemsize + out_itemsize) + R * 2 * 4,
        transcendentals=0,
    )

    out2 = pl.pallas_call(
        _normalize_kernel,
        out_shape=jax.ShapeDtypeStruct((R, L), out_dtype),
        grid=(grid_rows, grid_cols),
        in_specs=[
            pl.BlockSpec((tr, 2), lambda i, j: (i, 0)),    # packed scale/bias
            pl.BlockSpec((tr, tl), lambda i, j: (i, j)),   # x tile
        ],
        out_specs=pl.BlockSpec((tr, tl), lambda i, j: (i, j)),
        compiler_params=pltpu.CompilerParams(
            dimension_semantics=(row_sem, pltpu.PARALLEL),
            vmem_limit_bytes=vmem_limit,
        ),
        cost_estimate=cost,
    )(sb_r, x2)

    return out2.reshape(B, C, H, W)


if __name__ == "__main__":
    key = jax.random.PRNGKey(0)
    B, C, H, W = 2, 4, 16, 16

    # Deterministic "dataset statistics" (module __init__ takes List[float]).
    means = jnp.array([0.485, 0.456, 0.406, 0.5], dtype=jnp.float32)
    sds = jnp.array([0.229, 0.224, 0.225, 0.25], dtype=jnp.float32)

    x = jax.random.uniform(key, (B, C, H, W), dtype=jnp.float32)

    out = normalize_layer(x, means, sds)
    out = jax.block_until_ready(out)

    # Reference check in plain JAX (same semantics as the PyTorch forward).
    ref = (x - means[None, :, None, None]) / sds[None, :, None, None]
    assert out.shape == (B, C, H, W)
    assert out.dtype == x.dtype
    # multiply-by-reciprocal vs true divide: ~1 ulp difference, inside tol.
    assert jnp.allclose(out, ref, atol=1e-5, rtol=1e-6)

    print("KERNEL_OK")
</pallas_src>

<mosaic_0001>
module attributes {stable_mosaic.version = 11 : i64} {
  func.func @_normalize_kernel(%arg0: i32, %arg1: i32, %arg2: memref<8x2xf32, #tpu.memory_space<vmem>>, %arg3: memref<8x256xf32, #tpu.memory_space<vmem>>, %arg4: memref<8x256xf32, #tpu.memory_space<vmem>>) attributes {dimension_semantics = [#tpu.dimension_semantics<parallel>, #tpu.dimension_semantics<parallel>], iteration_bounds = array<i64: 1, 1>, scalar_prefetch = 0 : i64, scratch_operands = 0 : i64, tpu.core_type = #tpu.core_type<tc>, window_params = [{transform_indices = @transform_0, window_bounds = array<i64: 8, 2>}, {transform_indices = @transform_1, window_bounds = array<i64: 8, 256>}, {transform_indices = @transform_2, window_bounds = array<i64: 8, 256>}]} {
    %c0 = arith.constant 0 : index
    %c0_0 = arith.constant 0 : index
    %0 = vector.load %arg2[%c0, %c0_0] : memref<8x2xf32, #tpu.memory_space<vmem>>, vector<8x2xf32>
    %1 = vector.extract_strided_slice %0 {offsets = [0, 0], sizes = [8, 1], strides = [1, 1]} : vector<8x2xf32> to vector<8x1xf32>
    %2 = vector.extract_strided_slice %0 {offsets = [0, 1], sizes = [8, 1], strides = [1, 1]} : vector<8x2xf32> to vector<8x1xf32>
    %c0_1 = arith.constant 0 : index
    %c0_2 = arith.constant 0 : index
    %3 = vector.load %arg3[%c0_1, %c0_2] : memref<8x256xf32, #tpu.memory_space<vmem>>, vector<8x256xf32>
    %4 = vector.broadcast %1 : vector<8x1xf32> to vector<8x256xf32>
    %5 = arith.mulf %3, %4 : vector<8x256xf32>
    %6 = vector.broadcast %2 : vector<8x1xf32> to vector<8x256xf32>
    %7 = arith.addf %5, %6 : vector<8x256xf32>
    %c0_3 = arith.constant 0 : index
    %c0_4 = arith.constant 0 : index
    %8 = vector.load %arg4[%c0_3, %c0_4] : memref<8x256xf32, #tpu.memory_space<vmem>>, vector<8x256xf32>
    tpu.vector_store %arg4[%c0_3, %c0_4], %7 {strides = array<i32>} : memref<8x256xf32, #tpu.memory_space<vmem>>, vector<8x256xf32>,
    return
  }
  func.func @transform_0(%arg0: i32, %arg1: i32) -> (i32, i32) {
    %c0_i32 = arith.constant 0 : i32
    %c0_i32_0 = arith.constant 0 : i32
    return %arg0, %c0_i32 : i32, i32
  }
  func.func @transform_1(%arg0: i32, %arg1: i32) -> (i32, i32) {
    %c0_i32 = arith.constant 0 : i32
    return %arg0, %arg1 : i32, i32
  }
  func.func @transform_2(%arg0: i32, %arg1: i32) -> (i32, i32) {
    %c0_i32 = arith.constant 0 : i32
    return %arg0, %arg1 : i32, i32
  }
}

</mosaic_0001>

<llo_original>
// kernel: tpu_custom_call.1
$region0: #{tpu_custom_call.1}
  #allocation0 [shape = 'u32[]', space=smem, size = 0x4, offset = 0x4, fixed_abs, tag = 'smem constant byte address 0x4 - core index']
  #allocation1 [shape = 'u32[144,128]{1,0:T(1,128)}', space=vmem, size = 0x12000, scoped, tag = 'internal scratch']
  %s0 = inlined_call_operand.vmem [shape: f32[8,2], index: 0, kind: input, shape index: {}]
  %s1 = inlined_call_operand.hbm [shape: f32[8,256], index: 1, kind: input, shape index: {}]
  %s2 = inlined_call_operand.hbm [shape: f32[8,256], index: 2, kind: output, shape index: {}]
  %s3 = sld [smem:[#allocation0]]
  $region22: #{tpu_custom_call.1} parent=0
    _
  %s5 = ssub.s32 1, %s3
  %s6 = scalar_select 0, %s5, %s3
  $region1: #{tpu_custom_call.1} parent=0
    #allocation2 [shape = 'u8[8192]{0}', space=vmem, size = 0x2000, scoped, tag = 'input window, operand 1, single buffered']
    #allocation3 [shape = 's32[1]{0}', space=sflag, size = 0x4, scoped, tag = 'scoped memory for tpu_custom_call.1']
    #allocation4 [shape = 's32[1]{0}', space=sflag, size = 0x4, scoped, tag = 'scoped memory for tpu_custom_call.1']
    #allocation5 [shape = 'u8[8192]{0}', space=vmem, size = 0x2000, scoped, tag = 'output window, operand 0, single buffered']
    %7 = vsyncpa [#allocation3], 0
    %8 = vsyncpa [#allocation4], 0
    // Predicated region
    $region2: #{tpu_custom_call.1} parent=1 // pred_check
      _
    $region3: #{tpu_custom_call.1} parent=1 // pred_check_branch
      %10 = sbr.rel (0) target = $region5
    $region4: #{tpu_custom_call.1} parent=1 // pred_region
      _
    $region5: #{tpu_custom_call.1} parent=1 // pred_fallthru
      _
    // Predicated region
    $region6: #{tpu_custom_call.1} parent=1 // pred_check
      _
    $region7: #{tpu_custom_call.1} parent=1 // pred_check_branch
      %12 = sbr.rel (0) target = $region9
    $region8: #{tpu_custom_call.1} parent=1 // pred_region
      %s14 = ssub.s32 256, 256
      %15 = vsyncadd [#allocation3], %s14
      %s17 = sshll.u32 [#allocation2], 4
      %s18 = int_to_ptr.vmem [resolvable:$true] %s17
      %20 = dma.hbm_to_vmem [thread:$0]  %s1, 256, %s18, [#allocation3]
    $region9: #{tpu_custom_call.1} parent=1 // pred_fallthru
      _
    // Predicated region
    $region10: #{tpu_custom_call.1} parent=1 // pred_check
      _
    $region11: #{tpu_custom_call.1} parent=1 // pred_check_branch
      %22 = sbr.rel (0) target = $region13
    $region12: #{tpu_custom_call.1} parent=1 // pred_region
      %23 = dma.done [#allocation3], 256
    $region13: #{tpu_custom_call.1} parent=1 // pred_fallthru
      _
    %v24 = vld [vmem:[%s0] sm:$0xff]
    %v25 = vld [vmem:[#allocation2] sm:$0xff]
    %v26 = vld [vmem:[#allocation2 + $0x8] sm:$0xff]
    %28 = vset.pattern.permute.xlu0 0
    %29 = vperm.xlu0 %28, %v24
    %v30 = vpop.permute.xlu0 %29
    %v32 = vmul.f32 %v25, %v30
    %v33 = vmul.f32 %v26, %v30
    %34 = vset.pattern.permute.xlu0 1
    %35 = vperm.xlu0 %34, %v24
    %v36 = vpop.permute.xlu0 %35
    %v38 = vadd.f32 %v32, %v36
    %v39 = vadd.f32 %v33, %v36
    %40 = vst [vmem:[#allocation5] sm:$0xff] %v38
    %41 = vst [vmem:[#allocation5 + $0x8] sm:$0xff] %v39
    // Predicated region
    $region14: #{tpu_custom_call.1} parent=1 // pred_check
      _
    $region15: #{tpu_custom_call.1} parent=1 // pred_check_branch
      %43 = sbr.rel (0) target = $region17
    $region16: #{tpu_custom_call.1} parent=1 // pred_region
      %s45 = ssub.s32 256, 256
      %46 = vsyncadd [#allocation4], %s45
      %s48 = sshll.u32 [#allocation5], 4
      %s49 = int_to_ptr.vmem [resolvable:$true] %s48
      %51 = dma.vmem_to_hbm [thread:$0]  %s49, 256, %s2, [#allocation4]
    $region17: #{tpu_custom_call.1} parent=1 // pred_fallthru
      _
    // Predicated region
    $region18: #{tpu_custom_call.1} parent=1 // pred_check
      _
    $region19: #{tpu_custom_call.1} parent=1 // pred_check_branch
      %53 = sbr.rel (0) target = $region21
    $region20: #{tpu_custom_call.1} parent=1 // pred_region
      %54 = dma.done [#allocation4], 256
    $region21: #{tpu_custom_call.1} parent=1 // pred_fallthru
      _
    %55 = vsyncpa [#allocation3], 1
    %56 = vsyncpa [#allocation4], 1

</llo_original>
